<compile_context>
chip_gen: v7x
topology: tpu7x:2x2x1
jax: 0.10.0
libtpu: 0.0.40
codegen_flags: <defaults>
</compile_context>

<pallas_src>
import numpy as np

import jax
import jax.numpy as jnp
from jax.experimental import pallas as pl
from jax.experimental.pallas import tpu as pltpu

EPS = 1e-5  # PyTorch BatchNorm2d default eps


# ----------------------------- Pallas kernel -------------------------------

def _policy_kernel(x_ref, m1_ref, b1_ref, g1_ref, be1_ref, q1_ref,
                   m2_ref, b2_ref, g2_ref, be2_ref, q2_ref,
                   wht_ref, bh_ref, o_ref):
    """Fused Conv+BN -> Conv+BN+Sigmoid -> Linear -> Softmax.

    x:   (N, C*25)   NCHW-flattened input
    m*:  conv-as-matmul matrices, b*/g*/be*: per-COLUMN bias/gamma/beta rows
    q*:  block-diagonal group-averaging matrices (per-channel mean of columns)
    wht: (45, A) head weight (pre-transposed), bh: (1, A)
    o:   (N, A) action probabilities
    """
    n = x_ref.shape[0]
    inv_n = 1.0 / n

    def conv_bn(x, m_ref, b_ref, g_ref, be_ref, q_ref):
        # convolution (exact, as a dense matmul) + conv bias
        y = jnp.dot(x, m_ref[...], preferred_element_type=jnp.float32) + b_ref[...]
        # train-mode BatchNorm: per-channel mean/var over (N, H, W).
        # Columns are channel-major, so one row-sum + one matmul with the
        # group-averaging matrix Q yields the per-column (broadcast) stats.
        mean = jnp.dot(jnp.sum(y, axis=0, keepdims=True) * inv_n, q_ref[...],
                       preferred_element_type=jnp.float32)
        cen = y - mean
        var = jnp.dot(jnp.sum(cen * cen, axis=0, keepdims=True) * inv_n, q_ref[...],
                      preferred_element_type=jnp.float32)
        # fold gamma*rsqrt(var+eps) and beta-mean*scale into one scale/shift
        scale = g_ref[...] * jax.lax.rsqrt(var + EPS)
        shift = be_ref[...] - mean * scale
        return y * scale + shift

    a1 = conv_bn(x_ref[...], m1_ref, b1_ref, g1_ref, be1_ref, q1_ref)
    z2 = conv_bn(a1, m2_ref, b2_ref, g2_ref, be2_ref, q2_ref)

    # Sigmoid via EUP reciprocal (otherwise-idle slot).
    s = pl.reciprocal(1.0 + jnp.exp(-z2), approx=True)

    # Columns of `s` are already in NCHW flatten order (c*9 + i*3 + j), so the
    # PyTorch Flatten is implicit.  Linear head + numerically stable softmax.
    logits = jnp.dot(s, wht_ref[...], preferred_element_type=jnp.float32) + bh_ref[...]
    mx = jnp.max(logits, axis=-1, keepdims=True)
    e = jnp.exp(logits - mx)
    o_ref[...] = e * pl.reciprocal(jnp.sum(e, axis=-1, keepdims=True), approx=True)


# -------------------- one-time host-side parameter prep ---------------------

def _conv_as_matmul(w, h, w_in):
    """Conv weight (OC, C, k, k) -> dense matrix M of shape
    (C*h*w_in, OC*oh*ow), so that (NCHW-flat x) @ M == NCHW-flat conv(x)."""
    w = np.asarray(w, np.float32)
    oc, c, k, _ = w.shape
    oh, ow = h - k + 1, w_in - k + 1
    m = np.zeros((c, h, w_in, oc, oh, ow), np.float32)
    for oi in range(oh):
        for oj in range(ow):
            for di in range(k):
                for dj in range(k):
                    # m[ic, oi+di, oj+dj, oc, oi, oj] = w[oc, ic, di, dj]
                    m[:, oi + di, oj + dj, :, oi, oj] += w[:, :, di, dj].T
    return m.reshape(c * h * w_in, oc * oh * ow)


def _group_mean_matrix(n_ch, spatial):
    """Block-diagonal (n_ch*spatial)^2 matrix averaging columns per channel."""
    d = n_ch * spatial
    q = np.zeros((d, d), np.float32)
    for c in range(n_ch):
        q[c * spatial:(c + 1) * spatial, c * spatial:(c + 1) * spatial] = 1.0 / spatial
    return q


def prepare_params(raw):
    """Hoisted, one-time preprocessing of the PyTorch-layout parameters."""
    c = raw["w1"].shape[1]
    a = raw["wh"].shape[0]
    rep = lambda v, s: np.repeat(np.asarray(v, np.float32).reshape(-1), s)[None, :]
    pp = {
        "m1": _conv_as_matmul(raw["w1"], 5, 5),          # (C*25, 64)
        "b1": rep(raw["b1"], 16),                        # (1, 64)
        "g1": rep(raw["g1"], 16),
        "be1": rep(raw["be1"], 16),
        "q1": _group_mean_matrix(4, 16),                 # (64, 64)
        "m2": _conv_as_matmul(raw["w2"], 4, 4),          # (64, 45)
        "b2": rep(raw["b2"], 9),                         # (1, 45)
        "g2": rep(raw["g2"], 9),
        "be2": rep(raw["be2"], 9),
        "q2": _group_mean_matrix(5, 9),                  # (45, 45)
        "wht": np.asarray(raw["wh"], np.float32).T,      # (45, A)
        "bh": np.asarray(raw["bh"], np.float32).reshape(1, a),
    }
    assert pp["m1"].shape == (c * 25, 64)
    return {k: jnp.asarray(v) for k, v in pp.items()}


# ------------------------------- forward ------------------------------------

def policy_forward(pp, x):
    """x: (N, C, 5, 5) float32, NCHW (same as the PyTorch module)."""
    n = x.shape[0]
    num_actions = pp["wht"].shape[1]
    x2d = x.reshape(n, -1)  # contiguous NCHW flatten -> free reshape

    args = (x2d, pp["m1"], pp["b1"], pp["g1"], pp["be1"], pp["q1"],
            pp["m2"], pp["b2"], pp["g2"], pp["be2"], pp["q2"],
            pp["wht"], pp["bh"])

    return pl.pallas_call(
        _policy_kernel,
        out_shape=jax.ShapeDtypeStruct((n, num_actions), jnp.float32),
        in_specs=[pl.BlockSpec(memory_space=pltpu.MemorySpace.VMEM)] * len(args),
        out_specs=pl.BlockSpec(memory_space=pltpu.MemorySpace.VMEM),
    )(*args)


# --------------------------------- driver -----------------------------------

if __name__ == "__main__":
    num_channels, num_actions, batch = 4, 3, 2

    key = jax.random.PRNGKey(0)
    ks = jax.random.split(key, 8)

    def uinit(k, shape, fan_in):
        # PyTorch default conv/linear init: U(-1/sqrt(fan_in), 1/sqrt(fan_in))
        bound = 1.0 / (fan_in ** 0.5)
        return jax.random.uniform(k, shape, jnp.float32, -bound, bound)

    raw_params = {
        "w1": uinit(ks[0], (4, num_channels, 2, 2), num_channels * 4),
        "b1": uinit(ks[1], (4,), num_channels * 4),
        "g1": jnp.ones((4,), jnp.float32),    # BatchNorm2d(4) weight init
        "be1": jnp.zeros((4,), jnp.float32),  # BatchNorm2d(4) bias init
        "w2": uinit(ks[2], (5, 4, 2, 2), 4 * 4),
        "b2": uinit(ks[3], (5,), 4 * 4),
        "g2": jnp.ones((5,), jnp.float32),
        "be2": jnp.zeros((5,), jnp.float32),
        "wh": uinit(ks[4], (num_actions, 45), 45),
        "bh": uinit(ks[5], (num_actions,), 45),
    }

    prepared = prepare_params(raw_params)  # one-time host preprocessing

    # Input spatial size must be 5x5 so the flattened conv features hit Linear(45, A).
    x = jax.random.normal(ks[6], (batch, num_channels, 5, 5), jnp.float32)

    probs = jax.jit(policy_forward)(prepared, x)
    jax.block_until_ready(probs)

    assert probs.shape == (batch, num_actions)
    assert bool(jnp.all(jnp.isfinite(probs)))
    # approx (EUP) reciprocal in the softmax denominator -> allow a small slack
    assert bool(jnp.allclose(jnp.sum(probs, axis=-1), 1.0, atol=5e-3))
    # TODO(synk): BatchNorm running-stat buffer updates (a training-mode side
    # effect of the PyTorch forward) are not modeled; they don't affect the output.
    print("KERNEL_OK")
</pallas_src>

<mosaic_0001>
module attributes {stable_mosaic.version = 11 : i64} {
  func.func @_policy_kernel(%arg0: memref<2x100xf32, #tpu.memory_space<vmem>>, %arg1: memref<100x64xf32, #tpu.memory_space<vmem>>, %arg2: memref<1x64xf32, #tpu.memory_space<vmem>>, %arg3: memref<1x64xf32, #tpu.memory_space<vmem>>, %arg4: memref<1x64xf32, #tpu.memory_space<vmem>>, %arg5: memref<64x64xf32, #tpu.memory_space<vmem>>, %arg6: memref<64x45xf32, #tpu.memory_space<vmem>>, %arg7: memref<1x45xf32, #tpu.memory_space<vmem>>, %arg8: memref<1x45xf32, #tpu.memory_space<vmem>>, %arg9: memref<1x45xf32, #tpu.memory_space<vmem>>, %arg10: memref<45x45xf32, #tpu.memory_space<vmem>>, %arg11: memref<45x3xf32, #tpu.memory_space<vmem>>, %arg12: memref<1x3xf32, #tpu.memory_space<vmem>>, %arg13: memref<2x3xf32, #tpu.memory_space<vmem>>) attributes {dimension_semantics = [], scalar_prefetch = 0 : i64, scratch_operands = 0 : i64, tpu.core_type = #tpu.core_type<tc>} {
    %c0 = arith.constant 0 : index
    %c0_0 = arith.constant 0 : index
    %0 = vector.load %arg0[%c0, %c0_0] : memref<2x100xf32, #tpu.memory_space<vmem>>, vector<2x100xf32>
    %c0_1 = arith.constant 0 : index
    %c0_2 = arith.constant 0 : index
    %1 = vector.load %arg1[%c0_1, %c0_2] : memref<100x64xf32, #tpu.memory_space<vmem>>, vector<100x64xf32>
    %cst = arith.constant dense<0.000000e+00> : vector<2x64xf32>
    %2 = tpu.matmul %0, %1, %cst {dimension_numbers = #tpu.dot_dimension_numbers<[1], [0], [0], [1], [0, 0, 1, 1], [], []>} : vector<2x100xf32>, vector<100x64xf32>, vector<2x64xf32> -> vector<2x64xf32>
    %c0_3 = arith.constant 0 : index
    %c0_4 = arith.constant 0 : index
    %3 = vector.load %arg2[%c0_3, %c0_4] : memref<1x64xf32, #tpu.memory_space<vmem>>, vector<1x64xf32>
    %4 = vector.broadcast %3 : vector<1x64xf32> to vector<2x64xf32>
    %5 = arith.addf %2, %4 : vector<2x64xf32>
    %cst_5 = arith.constant dense<0.000000e+00> : vector<64xf32>
    %6 = vector.multi_reduction <add>, %5, %cst_5 [0] : vector<2x64xf32> to vector<64xf32>
    %7 = vector.shape_cast %6 : vector<64xf32> to vector<1x64xf32>
    %cst_6 = arith.constant 5.000000e-01 : f32
    %8 = vector.broadcast %cst_6 : f32 to vector<1x64xf32>
    %9 = arith.mulf %7, %8 : vector<1x64xf32>
    %c0_7 = arith.constant 0 : index
    %c0_8 = arith.constant 0 : index
    %10 = vector.load %arg5[%c0_7, %c0_8] : memref<64x64xf32, #tpu.memory_space<vmem>>, vector<64x64xf32>
    %cst_9 = arith.constant dense<0.000000e+00> : vector<1x64xf32>
    %11 = tpu.matmul %9, %10, %cst_9 {dimension_numbers = #tpu.dot_dimension_numbers<[1], [0], [0], [1], [0, 0, 1, 1], [], []>} : vector<1x64xf32>, vector<64x64xf32>, vector<1x64xf32> -> vector<1x64xf32>
    %12 = vector.broadcast %11 : vector<1x64xf32> to vector<2x64xf32>
    %13 = arith.subf %5, %12 : vector<2x64xf32>
    %14 = arith.mulf %13, %13 : vector<2x64xf32>
    %cst_10 = arith.constant dense<0.000000e+00> : vector<64xf32>
    %15 = vector.multi_reduction <add>, %14, %cst_10 [0] : vector<2x64xf32> to vector<64xf32>
    %16 = vector.shape_cast %15 : vector<64xf32> to vector<1x64xf32>
    %cst_11 = arith.constant 5.000000e-01 : f32
    %17 = vector.broadcast %cst_11 : f32 to vector<1x64xf32>
    %18 = arith.mulf %16, %17 : vector<1x64xf32>
    %c0_12 = arith.constant 0 : index
    %c0_13 = arith.constant 0 : index
    %19 = vector.load %arg5[%c0_12, %c0_13] : memref<64x64xf32, #tpu.memory_space<vmem>>, vector<64x64xf32>
    %cst_14 = arith.constant dense<0.000000e+00> : vector<1x64xf32>
    %20 = tpu.matmul %18, %19, %cst_14 {dimension_numbers = #tpu.dot_dimension_numbers<[1], [0], [0], [1], [0, 0, 1, 1], [], []>} : vector<1x64xf32>, vector<64x64xf32>, vector<1x64xf32> -> vector<1x64xf32>
    %c0_15 = arith.constant 0 : index
    %c0_16 = arith.constant 0 : index
    %21 = vector.load %arg3[%c0_15, %c0_16] : memref<1x64xf32, #tpu.memory_space<vmem>>, vector<1x64xf32>
    %cst_17 = arith.constant 9.99999974E-6 : f32
    %22 = vector.broadcast %cst_17 : f32 to vector<1x64xf32>
    %23 = arith.addf %20, %22 : vector<1x64xf32>
    %24 = math.rsqrt %23 : vector<1x64xf32>
    %25 = arith.mulf %21, %24 : vector<1x64xf32>
    %c0_18 = arith.constant 0 : index
    %c0_19 = arith.constant 0 : index
    %26 = vector.load %arg4[%c0_18, %c0_19] : memref<1x64xf32, #tpu.memory_space<vmem>>, vector<1x64xf32>
    %27 = arith.mulf %11, %25 : vector<1x64xf32>
    %28 = arith.subf %26, %27 : vector<1x64xf32>
    %29 = vector.broadcast %25 : vector<1x64xf32> to vector<2x64xf32>
    %30 = arith.mulf %5, %29 : vector<2x64xf32>
    %31 = vector.broadcast %28 : vector<1x64xf32> to vector<2x64xf32>
    %32 = arith.addf %30, %31 : vector<2x64xf32>
    %c0_20 = arith.constant 0 : index
    %c0_21 = arith.constant 0 : index
    %33 = vector.load %arg6[%c0_20, %c0_21] : memref<64x45xf32, #tpu.memory_space<vmem>>, vector<64x45xf32>
    %cst_22 = arith.constant dense<0.000000e+00> : vector<2x45xf32>
    %34 = tpu.matmul %32, %33, %cst_22 {dimension_numbers = #tpu.dot_dimension_numbers<[1], [0], [0], [1], [0, 0, 1, 1], [], []>} : vector<2x64xf32>, vector<64x45xf32>, vector<2x45xf32> -> vector<2x45xf32>
    %c0_23 = arith.constant 0 : index
    %c0_24 = arith.constant 0 : index
    %35 = vector.load %arg7[%c0_23, %c0_24] : memref<1x45xf32, #tpu.memory_space<vmem>>, vector<1x45xf32>
    %36 = vector.broadcast %35 : vector<1x45xf32> to vector<2x45xf32>
    %37 = arith.addf %34, %36 : vector<2x45xf32>
    %cst_25 = arith.constant dense<0.000000e+00> : vector<45xf32>
    %38 = vector.multi_reduction <add>, %37, %cst_25 [0] : vector<2x45xf32> to vector<45xf32>
    %39 = vector.shape_cast %38 : vector<45xf32> to vector<1x45xf32>
    %cst_26 = arith.constant 5.000000e-01 : f32
    %40 = vector.broadcast %cst_26 : f32 to vector<1x45xf32>
    %41 = arith.mulf %39, %40 : vector<1x45xf32>
    %c0_27 = arith.constant 0 : index
    %c0_28 = arith.constant 0 : index
    %42 = vector.load %arg10[%c0_27, %c0_28] : memref<45x45xf32, #tpu.memory_space<vmem>>, vector<45x45xf32>
    %cst_29 = arith.constant dense<0.000000e+00> : vector<1x45xf32>
    %43 = tpu.matmul %41, %42, %cst_29 {dimension_numbers = #tpu.dot_dimension_numbers<[1], [0], [0], [1], [0, 0, 1, 1], [], []>} : vector<1x45xf32>, vector<45x45xf32>, vector<1x45xf32> -> vector<1x45xf32>
    %44 = vector.broadcast %43 : vector<1x45xf32> to vector<2x45xf32>
    %45 = arith.subf %37, %44 : vector<2x45xf32>
    %46 = arith.mulf %45, %45 : vector<2x45xf32>
    %cst_30 = arith.constant dense<0.000000e+00> : vector<45xf32>
    %47 = vector.multi_reduction <add>, %46, %cst_30 [0] : vector<2x45xf32> to vector<45xf32>
    %48 = vector.shape_cast %47 : vector<45xf32> to vector<1x45xf32>
    %cst_31 = arith.constant 5.000000e-01 : f32
    %49 = vector.broadcast %cst_31 : f32 to vector<1x45xf32>
    %50 = arith.mulf %48, %49 : vector<1x45xf32>
    %c0_32 = arith.constant 0 : index
    %c0_33 = arith.constant 0 : index
    %51 = vector.load %arg10[%c0_32, %c0_33] : memref<45x45xf32, #tpu.memory_space<vmem>>, vector<45x45xf32>
    %cst_34 = arith.constant dense<0.000000e+00> : vector<1x45xf32>
    %52 = tpu.matmul %50, %51, %cst_34 {dimension_numbers = #tpu.dot_dimension_numbers<[1], [0], [0], [1], [0, 0, 1, 1], [], []>} : vector<1x45xf32>, vector<45x45xf32>, vector<1x45xf32> -> vector<1x45xf32>
    %c0_35 = arith.constant 0 : index
    %c0_36 = arith.constant 0 : index
    %53 = vector.load %arg8[%c0_35, %c0_36] : memref<1x45xf32, #tpu.memory_space<vmem>>, vector<1x45xf32>
    %cst_37 = arith.constant 9.99999974E-6 : f32
    %54 = vector.broadcast %cst_37 : f32 to vector<1x45xf32>
    %55 = arith.addf %52, %54 : vector<1x45xf32>
    %56 = math.rsqrt %55 : vector<1x45xf32>
    %57 = arith.mulf %53, %56 : vector<1x45xf32>
    %c0_38 = arith.constant 0 : index
    %c0_39 = arith.constant 0 : index
    %58 = vector.load %arg9[%c0_38, %c0_39] : memref<1x45xf32, #tpu.memory_space<vmem>>, vector<1x45xf32>
    %59 = arith.mulf %43, %57 : vector<1x45xf32>
    %60 = arith.subf %58, %59 : vector<1x45xf32>
    %61 = vector.broadcast %57 : vector<1x45xf32> to vector<2x45xf32>
    %62 = arith.mulf %37, %61 : vector<2x45xf32>
    %63 = vector.broadcast %60 : vector<1x45xf32> to vector<2x45xf32>
    %64 = arith.addf %62, %63 : vector<2x45xf32>
    %cst_40 = arith.constant 0.000000e+00 : f32
    %65 = vector.broadcast %cst_40 : f32 to vector<2x45xf32>
    %66 = arith.subf %65, %64 : vector<2x45xf32>
    %67 = math.exp %66 : vector<2x45xf32>
    %cst_41 = arith.constant 1.000000e+00 : f32
    %68 = vector.broadcast %cst_41 : f32 to vector<2x45xf32>
    %69 = arith.addf %68, %67 : vector<2x45xf32>
    %70 = tpu.reciprocal %69 {approx = true} : vector<2x45xf32> -> vector<2x45xf32>
    %c0_42 = arith.constant 0 : index
    %c0_43 = arith.constant 0 : index
    %71 = vector.load %arg11[%c0_42, %c0_43] : memref<45x3xf32, #tpu.memory_space<vmem>>, vector<45x3xf32>
    %cst_44 = arith.constant dense<0.000000e+00> : vector<2x3xf32>
    %72 = tpu.matmul %70, %71, %cst_44 {dimension_numbers = #tpu.dot_dimension_numbers<[1], [0], [0], [1], [0, 0, 1, 1], [], []>} : vector<2x45xf32>, vector<45x3xf32>, vector<2x3xf32> -> vector<2x3xf32>
    %c0_45 = arith.constant 0 : index
    %c0_46 = arith.constant 0 : index
    %73 = vector.load %arg12[%c0_45, %c0_46] : memref<1x3xf32, #tpu.memory_space<vmem>>, vector<1x3xf32>
    %74 = vector.broadcast %73 : vector<1x3xf32> to vector<2x3xf32>
    %75 = arith.addf %72, %74 : vector<2x3xf32>
    %cst_47 = arith.constant dense<0xFF800000> : vector<2xf32>
    %76 = vector.multi_reduction <maximumf>, %75, %cst_47 [1] : vector<2x3xf32> to vector<2xf32>
    %77 = vector.shape_cast %76 : vector<2xf32> to vector<2x1xf32>
    %78 = vector.broadcast %77 : vector<2x1xf32> to vector<2x3xf32>
    %79 = arith.subf %75, %78 : vector<2x3xf32>
    %80 = math.exp %79 : vector<2x3xf32>
    %cst_48 = arith.constant dense<0.000000e+00> : vector<2xf32>
    %81 = vector.multi_reduction <add>, %80, %cst_48 [1] : vector<2x3xf32> to vector<2xf32>
    %82 = vector.shape_cast %81 : vector<2xf32> to vector<2x1xf32>
    %83 = tpu.reciprocal %82 {approx = true} : vector<2x1xf32> -> vector<2x1xf32>
    %84 = vector.broadcast %83 : vector<2x1xf32> to vector<2x3xf32>
    %85 = arith.mulf %80, %84 : vector<2x3xf32>
    %c0_49 = arith.constant 0 : index
    %c0_50 = arith.constant 0 : index
    %86 = vector.load %arg13[%c0_49, %c0_50] : memref<2x3xf32, #tpu.memory_space<vmem>>, vector<2x3xf32>
    tpu.vector_store %arg13[%c0_49, %c0_50], %85 {strides = array<i32>} : memref<2x3xf32, #tpu.memory_space<vmem>>, vector<2x3xf32>,
    return
  }
}

</mosaic_0001>

<llo_original>
// kernel: policy_forward.1
$region0: #{policy_forward.1}
  #allocation0 [shape = 'u32[]', space=smem, size = 0x4, offset = 0x4, fixed_abs, tag = 'smem constant byte address 0x4 - core index']
  #allocation1 [shape = 'u32[144,128]{1,0:T(1,128)}', space=vmem, size = 0x12000, scoped, tag = 'internal scratch']
  %s0 = inlined_call_operand.vmem [shape: f32[2,100], index: 0, kind: input, shape index: {}]
  %s1 = inlined_call_operand.vmem [shape: f32[100,64], index: 1, kind: input, shape index: {}]
  %s2 = inlined_call_operand.vmem [shape: f32[1,64], index: 2, kind: input, shape index: {}]
  %s3 = inlined_call_operand.vmem [shape: f32[1,64], index: 3, kind: input, shape index: {}]
  %s4 = inlined_call_operand.vmem [shape: f32[1,64], index: 4, kind: input, shape index: {}]
  %s5 = inlined_call_operand.vmem [shape: f32[64,64], index: 5, kind: input, shape index: {}]
  %s6 = inlined_call_operand.vmem [shape: f32[64,45], index: 6, kind: input, shape index: {}]
  %s7 = inlined_call_operand.vmem [shape: f32[1,45], index: 7, kind: input, shape index: {}]
  %s8 = inlined_call_operand.vmem [shape: f32[1,45], index: 8, kind: input, shape index: {}]
  %s9 = inlined_call_operand.vmem [shape: f32[1,45], index: 9, kind: input, shape index: {}]
  %s10 = inlined_call_operand.vmem [shape: f32[45,45], index: 10, kind: input, shape index: {}]
  %s11 = inlined_call_operand.vmem [shape: f32[45,3], index: 11, kind: input, shape index: {}]
  %s12 = inlined_call_operand.vmem [shape: f32[1,3], index: 12, kind: input, shape index: {}]
  %s13 = inlined_call_operand.hbm [shape: f32[2,3], index: 13, kind: output, shape index: {}]
  %s14 = sld [smem:[#allocation0]]
  $region62: #{policy_forward.1} parent=0
    _
  %s16 = ssub.s32 1, %s14
  %s17 = scalar_select 0, %s16, %s14
  $region1: #{policy_forward.1} parent=0
    #allocation2 [shape = 'u8[1024]{0}', space=vmem, size = 0x400, scoped, tag = 'output window, operand 0, single buffered']
    #allocation3 [shape = 's32[1]{0}', space=sflag, size = 0x4, scoped, tag = 'scoped memory for policy_forward.1']
    %18 = vsyncpa [#allocation3], 0
    // Predicated region
    $region2: #{policy_forward.1} parent=1 // pred_check
      _
    $region3: #{policy_forward.1} parent=1 // pred_check_branch
      %20 = sbr.rel (0) target = $region5
    $region4: #{policy_forward.1} parent=1 // pred_region
      _
    $region5: #{policy_forward.1} parent=1 // pred_fallthru
      _
    // Predicated region
    $region6: #{policy_forward.1} parent=1 // pred_check
      _
    $region7: #{policy_forward.1} parent=1 // pred_check_branch
      %22 = sbr.rel (0) target = $region9
    $region8: #{policy_forward.1} parent=1 // pred_region
      _
    $region9: #{policy_forward.1} parent=1 // pred_fallthru
      _
    // Predicated region
    $region10: #{policy_forward.1} parent=1 // pred_check
      _
    $region11: #{policy_forward.1} parent=1 // pred_check_branch
      %24 = sbr.rel (0) target = $region13
    $region12: #{policy_forward.1} parent=1 // pred_region
      _
    $region13: #{policy_forward.1} parent=1 // pred_fallthru
      _
    // Predicated region
    $region14: #{policy_forward.1} parent=1 // pred_check
      _
    $region15: #{policy_forward.1} parent=1 // pred_check_branch
      %26 = sbr.rel (0) target = $region17
    $region16: #{policy_forward.1} parent=1 // pred_region
      _
    $region17: #{policy_forward.1} parent=1 // pred_fallthru
      _
    // Predicated region
    $region18: #{policy_forward.1} parent=1 // pred_check
      _
    $region19: #{policy_forward.1} parent=1 // pred_check_branch
      %28 = sbr.rel (0) target = $region21
    $region20: #{policy_forward.1} parent=1 // pred_region
      _
    $region21: #{policy_forward.1} parent=1 // pred_fallthru
      _
    // Predicated region
    $region22: #{policy_forward.1} parent=1 // pred_check
      _
    $region23: #{policy_forward.1} parent=1 // pred_check_branch
      %30 = sbr.rel (0) target = $region25
    $region24: #{policy_forward.1} parent=1 // pred_region
      _
    $region25: #{policy_forward.1} parent=1 // pred_fallthru
      _
    // Predicated region
    $region26: #{policy_forward.1} parent=1 // pred_check
      _
    $region27: #{policy_forward.1} parent=1 // pred_check_branch
      %32 = sbr.rel (0) target = $region29
    $region28: #{policy_forward.1} parent=1 // pred_region
      _
    $region29: #{policy_forward.1} parent=1 // pred_fallthru
      _
    // Predicated region
    $region30: #{policy_forward.1} parent=1 // pred_check
      _
    $region31: #{policy_forward.1} parent=1 // pred_check_branch
      %34 = sbr.rel (0) target = $region33
    $region32: #{policy_forward.1} parent=1 // pred_region
      _
    $region33: #{policy_forward.1} parent=1 // pred_fallthru
      _
    // Predicated region
    $region34: #{policy_forward.1} parent=1 // pred_check
      _
    $region35: #{policy_forward.1} parent=1 // pred_check_branch
      %36 = sbr.rel (0) target = $region37
    $region36: #{policy_forward.1} parent=1 // pred_region
      _
    $region37: #{policy_forward.1} parent=1 // pred_fallthru
      _
    // Predicated region
    $region38: #{policy_forward.1} parent=1 // pred_check
      _
    $region39: #{policy_forward.1} parent=1 // pred_check_branch
      %38 = sbr.rel (0) target = $region41
    $region40: #{policy_forward.1} parent=1 // pred_region
      _
    $region41: #{policy_forward.1} parent=1 // pred_fallthru
      _
    // Predicated region
    $region42: #{policy_forward.1} parent=1 // pred_check
      _
    $region43: #{policy_forward.1} parent=1 // pred_check_branch
      %40 = sbr.rel (0) target = $region45
    $region44: #{policy_forward.1} parent=1 // pred_region
      _
    $region45: #{policy_forward.1} parent=1 // pred_fallthru
      _
    // Predicated region
    $region46: #{policy_forward.1} parent=1 // pred_check
      _
    $region47: #{policy_forward.1} parent=1 // pred_check_branch
      %42 = sbr.rel (0) target = $region49
    $region48: #{policy_forward.1} parent=1 // pred_region
      _
    $region49: #{policy_forward.1} parent=1 // pred_fallthru
      _
    // Predicated region
    $region50: #{policy_forward.1} parent=1 // pred_check
      _
    $region51: #{policy_forward.1} parent=1 // pred_check_branch
      %44 = sbr.rel (0) target = $region53
    $region52: #{policy_forward.1} parent=1 // pred_region
      _
    $region53: #{policy_forward.1} parent=1 // pred_fallthru
      _
    %v45 = vld [vmem:[%s0] sm:$0x3]
    %v46 = vld [vmem:[%s1] sm:$0xff]
    %v47 = vld [vmem:[%s1 + $0x8] sm:$0xff]
    %v48 = vld [vmem:[%s1 + $0x10] sm:$0xff]
    %v49 = vld [vmem:[%s1 + $0x18] sm:$0xff]
    %v50 = vld [vmem:[%s1 + $0x20] sm:$0xff]
    %v51 = vld [vmem:[%s1 + $0x28] sm:$0xff]
    %v52 = vld [vmem:[%s1 + $0x30] sm:$0xff]
    %v53 = vld [vmem:[%s1 + $0x38] sm:$0xff]
    %v54 = vld [vmem:[%s1 + $0x40] sm:$0xff]
    %v55 = vld [vmem:[%s1 + $0x48] sm:$0xff]
    %v56 = vld [vmem:[%s1 + $0x50] sm:$0xff]
    %v57 = vld [vmem:[%s1 + $0x58] sm:$0xff]
    %v58 = vld [vmem:[%s1 + $0x60] sm:$0xf]
    %v59 = vld [vmem:[%s2] sm:$0x1]
    %v61 = vlaneseq
    %v62 = vshrl.u32 %v61, 7
    %v63 = vsub.s32 0, %v62
    %v64 = vrot.slane %v59, %v63
    %vm66 = vcmask 818176
    %v68 = vsel %vm66, %v45, 0
    %vm70 = vcmask 1043456
    %v72 = vsel %vm70, %v58, 0
    %74 = vmatprep.subr.mxu0 0.0
    %75 = vmatpush1.msra.mxu0 %v46
    %76 = vmatprep.subr.mxu0 0.0
    %77 = vmatpush1.msra.mxu0 %v47
    %78 = vmatprep.subr.mxu0 0.0
    %79 = vmatpush1.msra.mxu0 %v48
    %80 = vmatprep.subr.mxu0 0.0
    %81 = vmatpush1.msra.mxu0 %v49
    %82 = vmatprep.subr.mxu0 0.0
    %83 = vmatpush1.msra.mxu0 %v50
    %84 = vmatprep.subr.mxu0 0.0
    %85 = vmatpush1.msra.mxu0 %v51
    %86 = vmatprep.subr.mxu0 0.0
    %87 = vmatpush1.msra.mxu0 %v52
    %88 = vmatprep.subr.mxu0 0.0
    %89 = vmatpush1.msra.mxu0 %v53
    %90 = vmatprep.subr.mxu0 0.0
    %91 = vmatpush1.msra.mxu0 %v54
    %92 = vmatprep.subr.mxu0 0.0
    %93 = vmatpush1.msra.mxu0 %v55
    %94 = vmatprep.subr.mxu0 0.0
    %95 = vmatpush1.msra.mxu0 %v56
    %96 = vmatprep.subr.mxu0 0.0
    %97 = vmatpush1.msra.mxu0 %v57
    %98 = vmatprep.subr.mxu0 0.0
    %99 = vmatpush1.msra.mxu0 %v72
    %100 = vmatprep.subr.mxu0 0.0
    %101 = vmatpush1.msra.mxu0 0.0
    %102 = vmatprep.subr.mxu0 0.0
    %103 = vmatpush1.msra.mxu0 0.0
    %104 = vmatprep.subr.mxu0 0.0
    %105 = vmatpush1.msra.mxu0 0.0
    %106 = vmatprep.subr.mxu0 0.0
    %107 = vmatpush1.msra.mxu0 0.0
    %108 = vmatprep.subr.mxu0 0.0
    %109 = vmatpush1.msra.mxu0 0.0
    %110 = vmatprep.subr.mxu0 0.0
    %111 = vmatpush1.msra.mxu0 0.0
    %112 = vmatprep.subr.mxu0 0.0
    %113 = vmatpush1.msra.mxu0 0.0
    %114 = vmatprep.subr.mxu0 0.0
    %115 = vmatpush1.msra.mxu0 0.0
    %116 = vmatprep.subr.mxu0 0.0
    %117 = vmatpush1.msra.mxu0 0.0
    %118 = vmatprep.subr.mxu0 0.0
    %119 = vmatpush1.msra.mxu0 0.0
    %120 = vmatprep.subr.mxu0 0.0
    %121 = vmatpush1.msra.mxu0 0.0
    %122 = vmatprep.subr.mxu0 0.0
    %123 = vmatpush1.msra.mxu0 0.0
    %124 = vmatprep.subr.mxu0 0.0
    %125 = vmatpush1.msra.mxu0 0.0
    %126 = vmatprep.subr.mxu0 0.0
    %127 = vmatpush1.msra.mxu0 0.0
    %128 = vmatprep.subr.mxu0 0.0
    %129 = vmatpush1.msra.mxu0 0.0
    %130 = vmatprep.subr.mxu0 0.0
    %131 = vmatpush1.msra.mxu0 0.0
    %132 = vmatprep.subr.mxu0 0.0
    %133 = vmatpush1.msra.mxu0 0.0
    %134 = vmatprep.subr.mxu0 0.0
    %135 = vmatpush1.msra.mxu0 0.0
    %136 = vmatprep.subr.mxu0 0.0
    %137 = vmatpush1.msra.mxu0 0.0
    %138 = vmatprep.mubr.f32.mxu0 0.0
    %139 = vmatmul.mubr.f32.gmra.mrb[0].mxu0 %v68
    %v140 = vpop.f32.mrb[0].mxu0
    %v141 = vadd.f32 %v64, %v140
    %v142 = vpop.f32.mrb[0].mxu0
    %143 = vdwg.mxu0
    %vm144 = vcmask 517120
    %v145 = vsel %vm144, %v141, 0.0
    %v146 = vrot.slane %v145, 4
    %v147 = vadd.f32 %v145, %v146
    %v148 = vrot.slane %v147, 2
    %v149 = vadd.f32 %v147, %v148
    %v150 = vrot.slane %v149, 1
    %v151 = vadd.f32 %v149, %v150
    %v152 = vmul.f32 %v151, 0.5
    %v153 = vld [vmem:[%s5] sm:$0xff]
    %v154 = vld [vmem:[%s5 + $0x8] sm:$0xff]
    %v155 = vld [vmem:[%s5 + $0x10] sm:$0xff]
    %v156 = vld [vmem:[%s5 + $0x18] sm:$0xff]
    %v157 = vld [vmem:[%s5 + $0x20] sm:$0xff]
    %v158 = vld [vmem:[%s5 + $0x28] sm:$0xff]
    %v159 = vld [vmem:[%s5 + $0x30] sm:$0xff]
    %v160 = vld [vmem:[%s5 + $0x38] sm:$0xff]
    %vm161 = vcmask 523264
    %v163 = vsel %vm161, %v152, 0
    %165 = vmatprep.subr.mxu0 0.0
    %166 = vmatpush1.msra.mxu0 %v153
    %167 = vmatprep.subr.mxu0 0.0
    %168 = vmatpush1.msra.mxu0 %v154
    %169 = vmatprep.subr.mxu0 0.0
    %170 = vmatpush1.msra.mxu0 %v155
    %171 = vmatprep.subr.mxu0 0.0
    %172 = vmatpush1.msra.mxu0 %v156
    %173 = vmatprep.subr.mxu0 0.0
    %174 = vmatpush1.msra.mxu0 %v157
    %175 = vmatprep.subr.mxu0 0.0
    %176 = vmatpush1.msra.mxu0 %v158
    %177 = vmatprep.subr.mxu0 0.0
    %178 = vmatpush1.msra.mxu0 %v159
    %179 = vmatprep.subr.mxu0 0.0
    %180 = vmatpush1.msra.mxu0 %v160
    %181 = vmatprep.subr.mxu0 0.0
    %182 = vmatpush1.msra.mxu0 0.0
    %183 = vmatprep.subr.mxu0 0.0
    %184 = vmatpush1.msra.mxu0 0.0
    %185 = vmatprep.subr.mxu0 0.0
    %186 = vmatpush1.msra.mxu0 0.0
    %187 = vmatprep.subr.mxu0 0.0
    %188 = vmatpush1.msra.mxu0 0.0
    %189 = vmatprep.subr.mxu0 0.0
    %190 = vmatpush1.msra.mxu0 0.0
    %191 = vmatprep.subr.mxu0 0.0
    %192 = vmatpush1.msra.mxu0 0.0
    %193 = vmatprep.subr.mxu0 0.0
    %194 = vmatpush1.msra.mxu0 0.0
    %195 = vmatprep.subr.mxu0 0.0
    %196 = vmatpush1.msra.mxu0 0.0
    %197 = vmatprep.subr.mxu0 0.0
    %198 = vmatpush1.msra.mxu0 0.0
    %199 = vmatprep.subr.mxu0 0.0
    %200 = vmatpush1.msra.mxu0 0.0
    %201 = vmatprep.subr.mxu0 0.0
    %202 = vmatpush1.msra.mxu0 0.0
    %203 = vmatprep.subr.mxu0 0.0
    %204 = vmatpush1.msra.mxu0 0.0
    %205 = vmatprep.subr.mxu0 0.0
    %206 = vmatpush1.msra.mxu0 0.0
    %207 = vmatprep.subr.mxu0 0.0
    %208 = vmatpush1.msra.mxu0 0.0
    %209 = vmatprep.subr.mxu0 0.0
    %210 = vmatpush1.msra.mxu0 0.0
    %211 = vmatprep.subr.mxu0 0.0
    %212 = vmatpush1.msra.mxu0 0.0
    %213 = vmatprep.subr.mxu0 0.0
    %214 = vmatpush1.msra.mxu0 0.0
    %215 = vmatprep.subr.mxu0 0.0
    %216 = vmatpush1.msra.mxu0 0.0
    %217 = vmatprep.subr.mxu0 0.0
    %218 = vmatpush1.msra.mxu0 0.0
    %219 = vmatprep.subr.mxu0 0.0
    %220 = vmatpush1.msra.mxu0 0.0
    %221 = vmatprep.subr.mxu0 0.0
    %222 = vmatpush1.msra.mxu0 0.0
    %223 = vmatprep.subr.mxu0 0.0
    %224 = vmatpush1.msra.mxu0 0.0
    %225 = vmatprep.subr.mxu0 0.0
    %226 = vmatpush1.msra.mxu0 0.0
    %227 = vmatprep.subr.mxu0 0.0
    %228 = vmatpush1.msra.mxu0 0.0
    %229 = vmatprep.mubr.f32.mxu0 0.0
    %230 = vmatmul.mubr.f32.gmra.mrb[0].mxu0 %v163
    %v231 = vpop.f32.mrb[0].mxu0
    %v232 = vadd.f32 0.0, %v231
    %v233 = vpop.f32.mrb[0].mxu0
    %234 = vdwg.mxu0
    %v235 = vlaneseq
    %v236 = vshrl.u32 %v235, 7
    %v237 = vsub.s32 0, %v236
    %v238 = vrot.slane %v232, %v237
    %v239 = vsub.f32 %v141, %v238
    %v240 = vmul.f32 %v239, %v239
    %v241 = vsel %vm144, %v240, 0.0
    %v242 = vrot.slane %v241, 4
    %v243 = vadd.f32 %v241, %v242
    %v244 = vrot.slane %v243, 2
    %v245 = vadd.f32 %v243, %v244
    %v246 = vrot.slane %v245, 1
    %v247 = vadd.f32 %v245, %v246
    %v248 = vmul.f32 %v247, 0.5
    %v249 = vld [vmem:[%s3] sm:$0x1]
    %v251 = vsel %vm161, %v248, 0
    %253 = vmatprep.subr.mxu0 0.0
    %254 = vmatpush1.msra.mxu0 %v153
    %255 = vmatprep.subr.mxu0 0.0
    %256 = vmatpush1.msra.mxu0 %v154
    %257 = vmatprep.subr.mxu0 0.0
    %258 = vmatpush1.msra.mxu0 %v155
    %259 = vmatprep.subr.mxu0 0.0
    %260 = vmatpush1.msra.mxu0 %v156
    %261 = vmatprep.subr.mxu0 0.0
    %262 = vmatpush1.msra.mxu0 %v157
    %263 = vmatprep.subr.mxu0 0.0
    %264 = vmatpush1.msra.mxu0 %v158
    %265 = vmatprep.subr.mxu0 0.0
    %266 = vmatpush1.msra.mxu0 %v159
    %267 = vmatprep.subr.mxu0 0.0
    %268 = vmatpush1.msra.mxu0 %v160
    %269 = vmatprep.subr.mxu0 0.0
    %270 = vmatpush1.msra.mxu0 0.0
    %271 = vmatprep.subr.mxu0 0.0
    %272 = vmatpush1.msra.mxu0 0.0
    %273 = vmatprep.subr.mxu0 0.0
    %274 = vmatpush1.msra.mxu0 0.0
    %275 = vmatprep.subr.mxu0 0.0
    %276 = vmatpush1.msra.mxu0 0.0
    %277 = vmatprep.subr.mxu0 0.0
    %278 = vmatpush1.msra.mxu0 0.0
    %279 = vmatprep.subr.mxu0 0.0
    %280 = vmatpush1.msra.mxu0 0.0
    %281 = vmatprep.subr.mxu0 0.0
    %282 = vmatpush1.msra.mxu0 0.0
    %283 = vmatprep.subr.mxu0 0.0
    %284 = vmatpush1.msra.mxu0 0.0
    %285 = vmatprep.subr.mxu0 0.0
    %286 = vmatpush1.msra.mxu0 0.0
    %287 = vmatprep.subr.mxu0 0.0
    %288 = vmatpush1.msra.mxu0 0.0
    %289 = vmatprep.subr.mxu0 0.0
    %290 = vmatpush1.msra.mxu0 0.0
    %291 = vmatprep.subr.mxu0 0.0
    %292 = vmatpush1.msra.mxu0 0.0
    %293 = vmatprep.subr.mxu0 0.0
    %294 = vmatpush1.msra.mxu0 0.0
    %295 = vmatprep.subr.mxu0 0.0
    %296 = vmatpush1.msra.mxu0 0.0
    %297 = vmatprep.subr.mxu0 0.0
    %298 = vmatpush1.msra.mxu0 0.0
    %299 = vmatprep.subr.mxu0 0.0
    %300 = vmatpush1.msra.mxu0 0.0
    %301 = vmatprep.subr.mxu0 0.0
    %302 = vmatpush1.msra.mxu0 0.0
    %303 = vmatprep.subr.mxu0 0.0
    %304 = vmatpush1.msra.mxu0 0.0
    %305 = vmatprep.subr.mxu0 0.0
    %306 = vmatpush1.msra.mxu0 0.0
    %307 = vmatprep.subr.mxu0 0.0
    %308 = vmatpush1.msra.mxu0 0.0
    %309 = vmatprep.subr.mxu0 0.0
    %310 = vmatpush1.msra.mxu0 0.0
    %311 = vmatprep.subr.mxu0 0.0
    %312 = vmatpush1.msra.mxu0 0.0
    %313 = vmatprep.subr.mxu0 0.0
    %314 = vmatpush1.msra.mxu0 0.0
    %315 = vmatprep.subr.mxu0 0.0
    %316 = vmatpush1.msra.mxu0 0.0
    %317 = vmatprep.mubr.f32.mxu0 0.0
    %318 = vmatmul.mubr.f32.gmra.mrb[0].mxu0 %v251
    %v319 = vpop.f32.mrb[0].mxu0
    %v320 = vadd.f32 1e-05, %v319
    %v321 = vpop.f32.mrb[0].mxu0
    %322 = vdwg.mxu0
    %v323 = vrsqrt.pop %v320
    %v324 = vmul.f32 %v249, %v323
    %v325 = vld [vmem:[%s4] sm:$0x1]
    %v326 = vmul.f32 %v232, %v324
    %v327 = vsub.f32 %v325, %v326
    %v329 = vlaneseq
    %v330 = vshrl.u32 %v329, 7
    %v331 = vsub.s32 0, %v330
    %v332 = vrot.slane %v324, %v331
    %v334 = vmul.f32 %v141, %v332
    %v336 = vlaneseq
    %v337 = vshrl.u32 %v336, 7
    %v338 = vsub.s32 0, %v337
    %v339 = vrot.slane %v327, %v338
    %v341 = vadd.f32 %v334, %v339
    %v342 = vld [vmem:[%s6] sm:$0xff]
    %v343 = vld [vmem:[%s6 + $0x8] sm:$0xff]
    %v344 = vld [vmem:[%s6 + $0x10] sm:$0xff]
    %v345 = vld [vmem:[%s6 + $0x18] sm:$0xff]
    %v346 = vld [vmem:[%s6 + $0x20] sm:$0xff]
    %v347 = vld [vmem:[%s6 + $0x28] sm:$0xff]
    %v348 = vld [vmem:[%s6 + $0x30] sm:$0xff]
    %v349 = vld [vmem:[%s6 + $0x38] sm:$0xff]
    %v350 = vld [vmem:[%s7] sm:$0x1]
    %v352 = vlaneseq
    %v353 = vshrl.u32 %v352, 7
    %v354 = vsub.s32 0, %v353
    %v355 = vrot.slane %v350, %v354
    %v358 = vsel %vm161, %v341, 0
    %360 = vmatprep.subr.mxu0 0.0
    %361 = vmatpush1.msra.mxu0 %v342
    %362 = vmatprep.subr.mxu0 0.0
    %363 = vmatpush1.msra.mxu0 %v343
    %364 = vmatprep.subr.mxu0 0.0
    %365 = vmatpush1.msra.mxu0 %v344
    %366 = vmatprep.subr.mxu0 0.0
    %367 = vmatpush1.msra.mxu0 %v345
    %368 = vmatprep.subr.mxu0 0.0
    %369 = vmatpush1.msra.mxu0 %v346
    %370 = vmatprep.subr.mxu0 0.0
    %371 = vmatpush1.msra.mxu0 %v347
    %372 = vmatprep.subr.mxu0 0.0
    %373 = vmatpush1.msra.mxu0 %v348
    %374 = vmatprep.subr.mxu0 0.0
    %375 = vmatpush1.msra.mxu0 %v349
    %376 = vmatprep.subr.mxu0 0.0
    %377 = vmatpush1.msra.mxu0 0.0
    %378 = vmatprep.subr.mxu0 0.0
    %379 = vmatpush1.msra.mxu0 0.0
    %380 = vmatprep.subr.mxu0 0.0
    %381 = vmatpush1.msra.mxu0 0.0
    %382 = vmatprep.subr.mxu0 0.0
    %383 = vmatpush1.msra.mxu0 0.0
    %384 = vmatprep.subr.mxu0 0.0
    %385 = vmatpush1.msra.mxu0 0.0
    %386 = vmatprep.subr.mxu0 0.0
    %387 = vmatpush1.msra.mxu0 0.0
    %388 = vmatprep.subr.mxu0 0.0
    %389 = vmatpush1.msra.mxu0 0.0
    %390 = vmatprep.subr.mxu0 0.0
    %391 = vmatpush1.msra.mxu0 0.0
    %392 = vmatprep.subr.mxu0 0.0
    %393 = vmatpush1.msra.mxu0 0.0
    %394 = vmatprep.subr.mxu0 0.0
    %395 = vmatpush1.msra.mxu0 0.0
    %396 = vmatprep.subr.mxu0 0.0
    %397 = vmatpush1.msra.mxu0 0.0
    %398 = vmatprep.subr.mxu0 0.0
    %399 = vmatpush1.msra.mxu0 0.0
    %400 = vmatprep.subr.mxu0 0.0
    %401 = vmatpush1.msra.mxu0 0.0
    %402 = vmatprep.subr.mxu0 0.0
    %403 = vmatpush1.msra.mxu0 0.0
    %404 = vmatprep.subr.mxu0 0.0
    %405 = vmatpush1.msra.mxu0 0.0
    %406 = vmatprep.subr.mxu0 0.0
    %407 = vmatpush1.msra.mxu0 0.0
    %408 = vmatprep.subr.mxu0 0.0
    %409 = vmatpush1.msra.mxu0 0.0
    %410 = vmatprep.subr.mxu0 0.0
    %411 = vmatpush1.msra.mxu0 0.0
    %412 = vmatprep.subr.mxu0 0.0
    %413 = vmatpush1.msra.mxu0 0.0
    %414 = vmatprep.subr.mxu0 0.0
    %415 = vmatpush1.msra.mxu0 0.0
    %416 = vmatprep.subr.mxu0 0.0
    %417 = vmatpush1.msra.mxu0 0.0
    %418 = vmatprep.subr.mxu0 0.0
    %419 = vmatpush1.msra.mxu0 0.0
    %420 = vmatprep.subr.mxu0 0.0
    %421 = vmatpush1.msra.mxu0 0.0
    %422 = vmatprep.subr.mxu0 0.0
    %423 = vmatpush1.msra.mxu0 0.0
    %424 = vmatprep.mubr.f32.mxu0 0.0
    %425 = vmatmul.mubr.f32.gmra.mrb[0].mxu0 %v358
    %v426 = vpop.f32.mrb[0].mxu0
    %v427 = vadd.f32 %v355, %v426
    %v428 = vpop.f32.mrb[0].mxu0
    %429 = vdwg.mxu0
    %vm430 = vcmask 361472
    %v431 = vsel %vm430, %v427, 0.0
    %v432 = vrot.slane %v431, 4
    %v433 = vadd.f32 %v431, %v432
    %v434 = vrot.slane %v433, 2
    %v435 = vadd.f32 %v433, %v434
    %v436 = vrot.slane %v435, 1
    %v437 = vadd.f32 %v435, %v436
    %v438 = vmul.f32 %v437, 0.5
    %v439 = vld [vmem:[%s10] sm:$0xff]
    %v440 = vld [vmem:[%s10 + $0x8] sm:$0xff]
    %v441 = vld [vmem:[%s10 + $0x10] sm:$0xff]
    %v442 = vld [vmem:[%s10 + $0x18] sm:$0xff]
    %v443 = vld [vmem:[%s10 + $0x20] sm:$0xff]
    %v444 = vld [vmem:[%s10 + $0x28] sm:$0x1f]
    %vm445 = vcmask 367616
    %v447 = vsel %vm445, %v438, 0
    %vm449 = vcmask 1044480
    %v451 = vsel %vm449, %v444, 0
    %453 = vmatprep.subr.mxu0 0.0
    %454 = vmatpush1.msra.mxu0 %v439
    %455 = vmatprep.subr.mxu0 0.0
    %456 = vmatpush1.msra.mxu0 %v440
    %457 = vmatprep.subr.mxu0 0.0
    %458 = vmatpush1.msra.mxu0 %v441
    %459 = vmatprep.subr.mxu0 0.0
    %460 = vmatpush1.msra.mxu0 %v442
    %461 = vmatprep.subr.mxu0 0.0
    %462 = vmatpush1.msra.mxu0 %v443
    %463 = vmatprep.subr.mxu0 0.0
    %464 = vmatpush1.msra.mxu0 %v451
    %465 = vmatprep.subr.mxu0 0.0
    %466 = vmatpush1.msra.mxu0 0.0
    %467 = vmatprep.subr.mxu0 0.0
    %468 = vmatpush1.msra.mxu0 0.0
    %469 = vmatprep.subr.mxu0 0.0
    %470 = vmatpush1.msra.mxu0 0.0
    %471 = vmatprep.subr.mxu0 0.0
    %472 = vmatpush1.msra.mxu0 0.0
    %473 = vmatprep.subr.mxu0 0.0
    %474 = vmatpush1.msra.mxu0 0.0
    %475 = vmatprep.subr.mxu0 0.0
    %476 = vmatpush1.msra.mxu0 0.0
    %477 = vmatprep.subr.mxu0 0.0
    %478 = vmatpush1.msra.mxu0 0.0
    %479 = vmatprep.subr.mxu0 0.0
    %480 = vmatpush1.msra.mxu0 0.0
    %481 = vmatprep.subr.mxu0 0.0
    %482 = vmatpush1.msra.mxu0 0.0
    %483 = vmatprep.subr.mxu0 0.0
    %484 = vmatpush1.msra.mxu0 0.0
    %485 = vmatprep.subr.mxu0 0.0
    %486 = vmatpush1.msra.mxu0 0.0
    %487 = vmatprep.subr.mxu0 0.0
    %488 = vmatpush1.msra.mxu0 0.0
    %489 = vmatprep.subr.mxu0 0.0
    %490 = vmatpush1.msra.mxu0 0.0
    %491 = vmatprep.subr.mxu0 0.0
    %492 = vmatpush1.msra.mxu0 0.0
    %493 = vmatprep.subr.mxu0 0.0
    %494 = vmatpush1.msra.mxu0 0.0
    %495 = vmatprep.subr.mxu0 0.0
    %496 = vmatpush1.msra.mxu0 0.0
    %497 = vmatprep.subr.mxu0 0.0
    %498 = vmatpush1.msra.mxu0 0.0
    %499 = vmatprep.subr.mxu0 0.0
    %500 = vmatpush1.msra.mxu0 0.0
    %501 = vmatprep.subr.mxu0 0.0
    %502 = vmatpush1.msra.mxu0 0.0
    %503 = vmatprep.subr.mxu0 0.0
    %504 = vmatpush1.msra.mxu0 0.0
    %505 = vmatprep.subr.mxu0 0.0
    %506 = vmatpush1.msra.mxu0 0.0
    %507 = vmatprep.subr.mxu0 0.0
    %508 = vmatpush1.msra.mxu0 0.0
    %509 = vmatprep.subr.mxu0 0.0
    %510 = vmatpush1.msra.mxu0 0.0
    %511 = vmatprep.subr.mxu0 0.0
    %512 = vmatpush1.msra.mxu0 0.0
    %513 = vmatprep.subr.mxu0 0.0
    %514 = vmatpush1.msra.mxu0 0.0
    %515 = vmatprep.subr.mxu0 0.0
    %516 = vmatpush1.msra.mxu0 0.0
    %517 = vmatprep.mubr.f32.mxu0 0.0
    %518 = vmatmul.mubr.f32.gmra.mrb[0].mxu0 %v447
    %v519 = vpop.f32.mrb[0].mxu0
    %v520 = vadd.f32 0.0, %v519
    %v521 = vpop.f32.mrb[0].mxu0
    %522 = vdwg.mxu0
    %v523 = vlaneseq
    %v524 = vshrl.u32 %v523, 7
    %v525 = vsub.s32 0, %v524
    %v526 = vrot.slane %v520, %v525
    %v527 = vsub.f32 %v427, %v526
    %v528 = vmul.f32 %v527, %v527
    %v529 = vsel %vm430, %v528, 0.0
    %v530 = vrot.slane %v529, 4
    %v531 = vadd.f32 %v529, %v530
    %v532 = vrot.slane %v531, 2
    %v533 = vadd.f32 %v531, %v532
    %v534 = vrot.slane %v533, 1
    %v535 = vadd.f32 %v533, %v534
    %v536 = vmul.f32 %v535, 0.5
    %v537 = vld [vmem:[%s8] sm:$0x1]
    %v539 = vsel %vm445, %v536, 0
    %541 = vmatprep.subr.mxu0 0.0
    %542 = vmatpush1.msra.mxu0 %v439
    %543 = vmatprep.subr.mxu0 0.0
    %544 = vmatpush1.msra.mxu0 %v440
    %545 = vmatprep.subr.mxu0 0.0
    %546 = vmatpush1.msra.mxu0 %v441
    %547 = vmatprep.subr.mxu0 0.0
    %548 = vmatpush1.msra.mxu0 %v442
    %549 = vmatprep.subr.mxu0 0.0
    %550 = vmatpush1.msra.mxu0 %v443
    %551 = vmatprep.subr.mxu0 0.0
    %552 = vmatpush1.msra.mxu0 %v451
    %553 = vmatprep.subr.mxu0 0.0
    %554 = vmatpush1.msra.mxu0 0.0
    %555 = vmatprep.subr.mxu0 0.0
    %556 = vmatpush1.msra.mxu0 0.0
    %557 = vmatprep.subr.mxu0 0.0
    %558 = vmatpush1.msra.mxu0 0.0
    %559 = vmatprep.subr.mxu0 0.0
    %560 = vmatpush1.msra.mxu0 0.0
    %561 = vmatprep.subr.mxu0 0.0
    %562 = vmatpush1.msra.mxu0 0.0
    %563 = vmatprep.subr.mxu0 0.0
    %564 = vmatpush1.msra.mxu0 0.0
    %565 = vmatprep.subr.mxu0 0.0
    %566 = vmatpush1.msra.mxu0 0.0
    %567 = vmatprep.subr.mxu0 0.0
    %568 = vmatpush1.msra.mxu0 0.0
    %569 = vmatprep.subr.mxu0 0.0
    %570 = vmatpush1.msra.mxu0 0.0
    %571 = vmatprep.subr.mxu0 0.0
    %572 = vmatpush1.msra.mxu0 0.0
    %573 = vmatprep.subr.mxu0 0.0
    %574 = vmatpush1.msra.mxu0 0.0
    %575 = vmatprep.subr.mxu0 0.0
    %576 = vmatpush1.msra.mxu0 0.0
    %577 = vmatprep.subr.mxu0 0.0
    %578 = vmatpush1.msra.mxu0 0.0
    %579 = vmatprep.subr.mxu0 0.0
    %580 = vmatpush1.msra.mxu0 0.0
    %581 = vmatprep.subr.mxu0 0.0
    %582 = vmatpush1.msra.mxu0 0.0
    %583 = vmatprep.subr.mxu0 0.0
    %584 = vmatpush1.msra.mxu0 0.0
    %585 = vmatprep.subr.mxu0 0.0
    %586 = vmatpush1.msra.mxu0 0.0
    %587 = vmatprep.subr.mxu0 0.0
    %588 = vmatpush1.msra.mxu0 0.0
    %589 = vmatprep.subr.mxu0 0.0
    %590 = vmatpush1.msra.mxu0 0.0
    %591 = vmatprep.subr.mxu0 0.0
    %592 = vmatpush1.msra.mxu0 0.0
    %593 = vmatprep.subr.mxu0 0.0
    %594 = vmatpush1.msra.mxu0 0.0
    %595 = vmatprep.subr.mxu0 0.0
    %596 = vmatpush1.msra.mxu0 0.0
    %597 = vmatprep.subr.mxu0 0.0
    %598 = vmatpush1.msra.mxu0 0.0
    %599 = vmatprep.subr.mxu0 0.0
    %600 = vmatpush1.msra.mxu0 0.0
    %601 = vmatprep.subr.mxu0 0.0
    %602 = vmatpush1.msra.mxu0 0.0
    %603 = vmatprep.subr.mxu0 0.0
    %604 = vmatpush1.msra.mxu0 0.0
    %605 = vmatprep.mubr.f32.mxu0 0.0
    %606 = vmatmul.mubr.f32.gmra.mrb[0].mxu0 %v539
    %v607 = vpop.f32.mrb[0].mxu0
    %v608 = vadd.f32 1e-05, %v607
    %v609 = vpop.f32.mrb[0].mxu0
    %610 = vdwg.mxu0
    %v611 = vrsqrt.pop %v608
    %v612 = vmul.f32 %v537, %v611
    %v613 = vld [vmem:[%s9] sm:$0x1]
    %v614 = vmul.f32 %v520, %v612
    %v615 = vsub.f32 %v613, %v614
    %v617 = vlaneseq
    %v618 = vshrl.u32 %v617, 7
    %v619 = vsub.s32 0, %v618
    %v620 = vrot.slane %v612, %v619
    %v622 = vmul.f32 %v427, %v620
    %v624 = vlaneseq
    %v625 = vshrl.u32 %v624, 7
    %v626 = vsub.s32 0, %v625
    %v627 = vrot.slane %v615, %v626
    %v629 = vadd.f32 %v622, %v627
    %v630 = vsub.f32 0.0, %v629
    %v631 = vmul.f32 %v630, 1.442695
    %v632 = vpow.pop %v631
    %v633 = vadd.f32 %v632, 1.0
    %v634 = vrcp.pop %v633
    %v635 = vld [vmem:[%s11] sm:$0xff]
    %v636 = vld [vmem:[%s11 + $0x8] sm:$0xff]
    %v637 = vld [vmem:[%s11 + $0x10] sm:$0xff]
    %v638 = vld [vmem:[%s11 + $0x18] sm:$0xff]
    %v639 = vld [vmem:[%s11 + $0x20] sm:$0xff]
    %v640 = vld [vmem:[%s11 + $0x28] sm:$0x1f]
    %v641 = vld [vmem:[%s12] sm:$0x1]
    %v643 = vlaneseq
    %v644 = vshrl.u32 %v643, 7
    %v645 = vsub.s32 0, %v644
    %v646 = vrot.slane %v641, %v645
    %v649 = vsel %vm445, %v634, 0
    %v652 = vsel %vm449, %v640, 0
    %654 = vmatprep.subr.mxu0 0.0
    %655 = vmatpush1.msra.mxu0 %v635
    %656 = vmatprep.subr.mxu0 0.0
    %657 = vmatpush1.msra.mxu0 %v636
    %658 = vmatprep.subr.mxu0 0.0
    %659 = vmatpush1.msra.mxu0 %v637
    %660 = vmatprep.subr.mxu0 0.0
    %661 = vmatpush1.msra.mxu0 %v638
    %662 = vmatprep.subr.mxu0 0.0
    %663 = vmatpush1.msra.mxu0 %v639
    %664 = vmatprep.subr.mxu0 0.0
    %665 = vmatpush1.msra.mxu0 %v652
    %666 = vmatprep.subr.mxu0 0.0
    %667 = vmatpush1.msra.mxu0 0.0
    %668 = vmatprep.subr.mxu0 0.0
    %669 = vmatpush1.msra.mxu0 0.0
    %670 = vmatprep.subr.mxu0 0.0
    %671 = vmatpush1.msra.mxu0 0.0
    %672 = vmatprep.subr.mxu0 0.0
    %673 = vmatpush1.msra.mxu0 0.0
    %674 = vmatprep.subr.mxu0 0.0
    %675 = vmatpush1.msra.mxu0 0.0
    %676 = vmatprep.subr.mxu0 0.0
    %677 = vmatpush1.msra.mxu0 0.0
    %678 = vmatprep.subr.mxu0 0.0
    %679 = vmatpush1.msra.mxu0 0.0
    %680 = vmatprep.subr.mxu0 0.0
    %681 = vmatpush1.msra.mxu0 0.0
    %682 = vmatprep.subr.mxu0 0.0
    %683 = vmatpush1.msra.mxu0 0.0
    %684 = vmatprep.subr.mxu0 0.0
    %685 = vmatpush1.msra.mxu0 0.0
    %686 = vmatprep.subr.mxu0 0.0
    %687 = vmatpush1.msra.mxu0 0.0
    %688 = vmatprep.subr.mxu0 0.0
    %689 = vmatpush1.msra.mxu0 0.0
    %690 = vmatprep.subr.mxu0 0.0
    %691 = vmatpush1.msra.mxu0 0.0
    %692 = vmatprep.subr.mxu0 0.0
    %693 = vmatpush1.msra.mxu0 0.0
    %694 = vmatprep.subr.mxu0 0.0
    %695 = vmatpush1.msra.mxu0 0.0
    %696 = vmatprep.subr.mxu0 0.0
    %697 = vmatpush1.msra.mxu0 0.0
    %698 = vmatprep.subr.mxu0 0.0
    %699 = vmatpush1.msra.mxu0 0.0
    %700 = vmatprep.subr.mxu0 0.0
    %701 = vmatpush1.msra.mxu0 0.0
    %702 = vmatprep.subr.mxu0 0.0
    %703 = vmatpush1.msra.mxu0 0.0
    %704 = vmatprep.subr.mxu0 0.0
    %705 = vmatpush1.msra.mxu0 0.0
    %706 = vmatprep.subr.mxu0 0.0
    %707 = vmatpush1.msra.mxu0 0.0
    %708 = vmatprep.subr.mxu0 0.0
    %709 = vmatpush1.msra.mxu0 0.0
    %710 = vmatprep.subr.mxu0 0.0
    %711 = vmatpush1.msra.mxu0 0.0
    %712 = vmatprep.subr.mxu0 0.0
    %713 = vmatpush1.msra.mxu0 0.0
    %714 = vmatprep.subr.mxu0 0.0
    %715 = vmatpush1.msra.mxu0 0.0
    %716 = vmatprep.subr.mxu0 0.0
    %717 = vmatpush1.msra.mxu0 0.0
    %718 = vmatprep.mubr.f32.mxu0 0.0
    %719 = vmatmul.mubr.f32.gmra.mrb[0].mxu0 %v649
    %v720 = vpop.f32.mrb[0].mxu0
    %v721 = vadd.f32 %v646, %v720
    %v722 = vpop.f32.mrb[0].mxu0
    %723 = vdwg.mxu0
    %vm724 = vcmask 17408
    %v725 = vsel %vm724, %v721, -inf
    %726 = vmax.xlane.f32.xlu0 %v725
    %v727 = vpop.xlane.xlu0 %726
    %v728 = vsub.f32 %v721, %v727
    %v729 = vmul.f32 %v728, 1.442695
    %v730 = vpow.pop %v729
    %v731 = vsel %vm724, %v730, 0.0
    %732 = vadd.xlane.f32.xlu0 %v731
    %v733 = vpop.xlane.xlu0 %732
    %v734 = vrcp.pop %v733
    %v735 = vmul.f32 %v730, %v734
    %736 = vst.msk [vmem:[#allocation2] sm:$0x3] %vm724, %v735
    // Predicated region
    $region54: #{policy_forward.1} parent=1 // pred_check
      _
    $region55: #{policy_forward.1} parent=1 // pred_check_branch
      %738 = sbr.rel (0) target = $region57
    $region56: #{policy_forward.1} parent=1 // pred_region
      %s740 = ssub.s32 32, 32
      %741 = vsyncadd [#allocation3], %s740
      %s743 = sshll.u32 [#allocation2], 4
      %s744 = int_to_ptr.vmem [resolvable:$true] %s743
      %746 = dma.vmem_to_hbm [thread:$0]  %s744, 32, %s13, [#allocation3]
    $region57: #{policy_forward.1} parent=1 // pred_fallthru
      _
    // Predicated region
    $region58: #{policy_forward.1} parent=1 // pred_check
      _
    $region59: #{policy_forward.1} parent=1 // pred_check_branch
      %748 = sbr.rel (0) target = $region61
    $region60: #{policy_forward.1} parent=1 // pred_region
      %749 = dma.done [#allocation3], 32
    $region61: #{policy_forward.1} parent=1 // pred_fallthru
      _
    %750 = vsyncpa [#allocation3], 1

</llo_original>
